<compile_context>
chip_gen: v6e
topology: v6e:2x2x1
jax: 0.10.0
libtpu: 0.0.40
codegen_flags: <defaults>
</compile_context>

<pallas_src>
import functools

import jax
import jax.numpy as jnp
from jax.experimental import pallas as pl
from jax.experimental.pallas import tpu as pltpu


def _round_up(x, m):
    return (x + m - 1) // m * m


# ----------------------------------------------------------------------------
# Banded / block-diagonal weight matrices (tiny, one-time, XLA side)
# ----------------------------------------------------------------------------
def _banded_matrix_3x3(w3_oihw, W, C, G):
    """Dense banded matrix M3 of shape ((G+2)*WPC, G*WC) such that for a
    row-group LHS built from G+2 consecutive zero-padded image rows
    (each (W+2)*C lanes wide), LHS @ M3 yields the 3x3 conv (pad=1) outputs of
    the G packed rows, flattened W*C lanes per row."""
    WC = W * C
    WPC = (W + 2) * C
    KL = (G + 2) * WPC
    LG = G * WC
    w3_hwio = jnp.transpose(w3_oihw, (2, 3, 1, 0))      # (kh, kw, ci, co)

    i = jnp.arange(KL)[:, None]                          # LHS lane
    j = jnp.arange(LG)[None, :]                          # output lane
    g = i // WPC                                         # row within group
    p = i % WPC                                          # lane within padded row
    px = p // C - 1                                      # unpadded column (-1..W)
    ci = p % C
    u = j // WC                                          # packed output row
    q = j % WC
    qx = q // C                                          # output column
    co = q % C
    dy = g - u                                           # kernel row tap
    dx = px - qx + 1                                     # kernel col tap
    valid = (dy >= 0) & (dy < 3) & (dx >= 0) & (dx < 3)
    vals = w3_hwio[jnp.clip(dy, 0, 2), jnp.clip(dx, 0, 2), ci, co]
    return jnp.where(valid, vals, 0.0).astype(jnp.float32)


def _blockdiag_matrix_1x1(w1_oi11, W, C, G):
    """Block-diagonal matrix M1 of shape (G*WC, G*WC): h_packed @ M1 applies
    the 1x1 conv per pixel in the packed-lane layout."""
    WC = W * C
    LG = G * WC
    w1_io = jnp.transpose(w1_oi11[:, :, 0, 0], (1, 0))   # (ci, co)
    i = jnp.arange(LG)[:, None]
    j = jnp.arange(LG)[None, :]
    same_pixel = (i // C) == (j // C)
    vals = w1_io[i % C, j % C]
    return jnp.where(same_pixel, vals, 0.0).astype(jnp.float32)


def _build_group_lhs(x_nhwc, G):
    """Overlapping zero-padded row windows: (N, H//G, (G+2)*(W+2)*C).
    Pure layout plumbing (pad + strided slices + concat), no transposes."""
    N, H, W, C = x_nhwc.shape
    WPC = (W + 2) * C
    R_img = H // G
    xp = jnp.pad(x_nhwc, ((0, 0), (1, 1), (1, 1), (0, 0)))        # (N,H+2,W+2,C)
    xp = xp.reshape(N, H + 2, WPC)
    parts = [xp[:, k:k + G * R_img:G, :] for k in range(G + 2)]   # (N,R_img,WPC)
    return jnp.concatenate(parts, axis=-1)


# ----------------------------------------------------------------------------
# Pallas kernel + wrappers
# ----------------------------------------------------------------------------
def resblock_pallas_nhwc(x_nhwc, w3, b3, w1, b1, *, use_bf16_mxu=False):
    """ResBlock forward. x_nhwc: (N, H, W, C) f32; params in PyTorch layout
    (w3: (C,C,3,3) OIHW, b3: (C,), w1: (C,C,1,1), b1: (C,))."""
    N, H, W, C = x_nhwc.shape
    WC = W * C

    # Lane-group packing: G image rows per >=128-lane group.
    if WC % 128 == 0:
        G = 1
    elif 128 % WC == 0 and H % (128 // WC) == 0:
        G = 128 // WC
    else:
        G = 1  # TODO(synk): sub-128-lane fallback; pad lanes for odd W*C.
    R_img = H // G                 # packed output rows per image
    LG = G * WC                    # lane-group width (>=128 on the fast path)
    R = N * R_img                  # total packed rows
    WPC = (W + 2) * C
    KL = (G + 2) * WPC             # LHS lanes per row (overlapping windows)
    KLp = _round_up(KL, 128)       # pad K to a lane-tile multiple

    compute_dtype = jnp.bfloat16 if use_bf16_mxu else jnp.float32

    # --- one-time weight/bias preprocessing (tiny, XLA side) ---
    m3 = _banded_matrix_3x3(w3, W, C, G)
    m3 = jnp.pad(m3, ((0, KLp - KL), (0, 0))).astype(compute_dtype)   # (KLp, LG)
    m1 = _blockdiag_matrix_1x1(w1, W, C, G).astype(compute_dtype)     # (LG, LG)
    b3row = jnp.tile(b3.astype(jnp.float32), G * W).reshape(1, LG)
    b1row = jnp.tile(b1.astype(jnp.float32), G * W).reshape(1, LG)

    # --- lane-dense activation views (layout plumbing only) ---
    lhs = _build_group_lhs(x_nhwc, G)                                  # (N,R_img,KL)
    lhs = jnp.pad(lhs, ((0, 0), (0, 0), (0, KLp - KL))).reshape(R, KLp)
    x_rows = x_nhwc.reshape(R, LG)          # free row-major reshape (residual)

    # --- row-block tiling: keep >=2 grid steps when possible (pipelining +
    #     v7x two-TC sharding); group images per step only for larger batches.
    if R_img % 8 == 0:
        ipb = 1
        for cand in (8, 4, 2):
            if N % cand == 0 and N // cand >= 2 and cand * R_img <= 512:
                ipb = cand
                break
        tr = ipb * R_img
    else:
        tr = R                              # single full block (always legal)
    grid = (R // tr,)

    def kernel(lhs_ref, x_ref, m3_ref, m1_ref, b3_ref, b1_ref, out_ref):
        # relu(pad(x)) == pad(relu(x)): margins stay zero.
        y = jnp.maximum(lhs_ref[...], 0.0).astype(compute_dtype)
        acc = jnp.dot(y, m3_ref[...], preferred_element_type=jnp.float32)
        h = jnp.maximum(acc + b3_ref[...], 0.0).astype(compute_dtype)
        out1 = jnp.dot(h, m1_ref[...], preferred_element_type=jnp.float32)
        out_ref[...] = (x_ref[...] + out1 + b1_ref[...]).astype(out_ref.dtype)

    cost = pl.CostEstimate(
        flops=2 * R * (KLp * LG + LG * LG),
        transcendentals=0,
        bytes_accessed=(R * (KLp + 2 * LG) + KLp * LG + LG * LG + 2 * LG) * 4,
    )

    out_rows = pl.pallas_call(
        kernel,
        out_shape=jax.ShapeDtypeStruct((R, LG), x_nhwc.dtype),
        grid_spec=pltpu.PrefetchScalarGridSpec(
            num_scalar_prefetch=0,
            grid=grid,
            in_specs=[
                pl.BlockSpec((tr, KLp), lambda i: (i, 0)),     # LHS windows
                pl.BlockSpec((tr, LG), lambda i: (i, 0)),      # residual x
                pl.BlockSpec((KLp, LG), lambda i: (0, 0)),     # banded 3x3
                pl.BlockSpec((LG, LG), lambda i: (0, 0)),      # block-diag 1x1
                pl.BlockSpec((1, LG), lambda i: (0, 0)),       # b3 (per lane)
                pl.BlockSpec((1, LG), lambda i: (0, 0)),       # b1 (per lane)
            ],
            out_specs=pl.BlockSpec((tr, LG), lambda i: (i, 0)),
        ),
        compiler_params=pltpu.CompilerParams(
            dimension_semantics=("parallel",)),
        cost_estimate=cost,
    )(lhs, x_rows, m3, m1, b3row, b1row)

    return out_rows.reshape(N, H, W, C)


def resblock_pallas_nchw(x_nchw, w3, b3, w1, b1, **kw):
    """Drop-in NCHW wrapper (single transpose each way, for PyTorch parity)."""
    x_nhwc = jnp.transpose(x_nchw, (0, 2, 3, 1))
    out = resblock_pallas_nhwc(x_nhwc, w3, b3, w1, b1, **kw)
    return jnp.transpose(out, (0, 3, 1, 2))


# ----------------------------------------------------------------------------
# pure-JAX reference (matches the PyTorch NCHW forward)
# ----------------------------------------------------------------------------
def resblock_ref_nchw(x_nchw, w3, b3, w1, b1):
    dn = jax.lax.conv_dimension_numbers(x_nchw.shape, w3.shape,
                                        ("NCHW", "OIHW", "NCHW"))
    y = jnp.maximum(x_nchw, 0.0)
    y = jax.lax.conv_general_dilated(y, w3, (1, 1), ((1, 1), (1, 1)),
                                     dimension_numbers=dn)
    y = y + b3.reshape(1, -1, 1, 1)
    y = jnp.maximum(y, 0.0)
    y = jax.lax.conv_general_dilated(y, w1, (1, 1), ((0, 0), (0, 0)),
                                     dimension_numbers=dn)
    y = y + b1.reshape(1, -1, 1, 1)
    return x_nchw + y


if __name__ == "__main__":
    N, C, H, W = 2, 4, 16, 16
    key = jax.random.PRNGKey(0)
    k_x, k_w3, k_b3, k_w1, k_b1 = jax.random.split(key, 5)

    x_nhwc = jax.random.normal(k_x, (N, H, W, C), dtype=jnp.float32)
    w3 = 0.1 * jax.random.normal(k_w3, (C, C, 3, 3), dtype=jnp.float32)
    b3 = 0.1 * jax.random.normal(k_b3, (C,), dtype=jnp.float32)
    w1 = 0.1 * jax.random.normal(k_w1, (C, C, 1, 1), dtype=jnp.float32)
    b1 = 0.1 * jax.random.normal(k_b1, (C,), dtype=jnp.float32)

    ref_nchw = resblock_ref_nchw(jnp.transpose(x_nhwc, (0, 3, 1, 2)),
                                 w3, b3, w1, b1)
    ref_nhwc = jnp.transpose(ref_nchw, (0, 2, 3, 1))

    # f32 path.  Tolerance is sized to also cover MXU bf16-pass rounding on
    # generations where default f32 matmul precision is reduced; structural
    # errors in the banded matrices would be O(0.1) and still trip it.
    out = jax.jit(resblock_pallas_nhwc)(x_nhwc, w3, b3, w1, b1)
    out = jax.block_until_ready(out)
    assert out.shape == (N, H, W, C)
    assert jnp.allclose(out, ref_nhwc, atol=2e-2, rtol=2e-2), \
        "f32 mismatch vs reference"

    # bf16-operand / f32-accumulate MXU path (review item for v6e / v7x).
    out_bf16 = jax.jit(functools.partial(resblock_pallas_nhwc,
                                         use_bf16_mxu=True))(
        x_nhwc, w3, b3, w1, b1)
    out_bf16 = jax.block_until_ready(out_bf16)
    assert jnp.allclose(out_bf16, ref_nhwc, atol=6e-2, rtol=6e-2), \
        "bf16 mismatch vs reference"

    print("KERNEL_OK")
</pallas_src>

<mosaic_0001>
module attributes {stable_mosaic.version = 11 : i64} {
  func.func @kernel(%arg0: i32, %arg1: memref<8x384xf32, #tpu.memory_space<vmem>>, %arg2: memref<8x128xf32, #tpu.memory_space<vmem>>, %arg3: memref<384x128xf32, #tpu.memory_space<vmem>>, %arg4: memref<128x128xf32, #tpu.memory_space<vmem>>, %arg5: memref<1x128xf32, #tpu.memory_space<vmem>>, %arg6: memref<1x128xf32, #tpu.memory_space<vmem>>, %arg7: memref<8x128xf32, #tpu.memory_space<vmem>>) attributes {dimension_semantics = [#tpu.dimension_semantics<parallel>], iteration_bounds = array<i64: 2>, scalar_prefetch = 0 : i64, scratch_operands = 0 : i64, tpu.core_type = #tpu.core_type<tc>, window_params = [{transform_indices = @transform_0, window_bounds = array<i64: 8, 384>}, {transform_indices = @transform_1, window_bounds = array<i64: 8, 128>}, {pipeline_mode = #tpu.pipeline_mode<synchronous>, transform_indices = @transform_2, window_bounds = array<i64: 384, 128>}, {pipeline_mode = #tpu.pipeline_mode<synchronous>, transform_indices = @transform_3, window_bounds = array<i64: 128, 128>}, {pipeline_mode = #tpu.pipeline_mode<synchronous>, transform_indices = @transform_4, window_bounds = array<i64: 1, 128>}, {pipeline_mode = #tpu.pipeline_mode<synchronous>, transform_indices = @transform_5, window_bounds = array<i64: 1, 128>}, {transform_indices = @transform_6, window_bounds = array<i64: 8, 128>}]} {
    %c0 = arith.constant 0 : index
    %c0_0 = arith.constant 0 : index
    %0 = vector.load %arg1[%c0, %c0_0] : memref<8x384xf32, #tpu.memory_space<vmem>>, vector<8x384xf32>
    %cst = arith.constant 0.000000e+00 : f32
    %1 = vector.broadcast %cst : f32 to vector<8x384xf32>
    %2 = arith.maximumf %0, %1 : vector<8x384xf32>
    %c0_1 = arith.constant 0 : index
    %c0_2 = arith.constant 0 : index
    %3 = vector.load %arg3[%c0_1, %c0_2] : memref<384x128xf32, #tpu.memory_space<vmem>>, vector<384x128xf32>
    %cst_3 = arith.constant dense<0.000000e+00> : vector<8x128xf32>
    %4 = tpu.matmul %2, %3, %cst_3 {dimension_numbers = #tpu.dot_dimension_numbers<[1], [0], [0], [1], [0, 0, 1, 1], [], []>} : vector<8x384xf32>, vector<384x128xf32>, vector<8x128xf32> -> vector<8x128xf32>
    %c0_4 = arith.constant 0 : index
    %c0_5 = arith.constant 0 : index
    %5 = vector.load %arg5[%c0_4, %c0_5] : memref<1x128xf32, #tpu.memory_space<vmem>>, vector<1x128xf32>
    %6 = vector.broadcast %5 : vector<1x128xf32> to vector<8x128xf32>
    %7 = arith.addf %4, %6 : vector<8x128xf32>
    %cst_6 = arith.constant 0.000000e+00 : f32
    %8 = vector.broadcast %cst_6 : f32 to vector<8x128xf32>
    %9 = arith.maximumf %7, %8 : vector<8x128xf32>
    %c0_7 = arith.constant 0 : index
    %c0_8 = arith.constant 0 : index
    %10 = vector.load %arg4[%c0_7, %c0_8] : memref<128x128xf32, #tpu.memory_space<vmem>>, vector<128x128xf32>
    %cst_9 = arith.constant dense<0.000000e+00> : vector<8x128xf32>
    %11 = tpu.matmul %9, %10, %cst_9 {dimension_numbers = #tpu.dot_dimension_numbers<[1], [0], [0], [1], [0, 0, 1, 1], [], []>} : vector<8x128xf32>, vector<128x128xf32>, vector<8x128xf32> -> vector<8x128xf32>
    %c0_10 = arith.constant 0 : index
    %c0_11 = arith.constant 0 : index
    %12 = vector.load %arg2[%c0_10, %c0_11] : memref<8x128xf32, #tpu.memory_space<vmem>>, vector<8x128xf32>
    %13 = arith.addf %12, %11 : vector<8x128xf32>
    %c0_12 = arith.constant 0 : index
    %c0_13 = arith.constant 0 : index
    %14 = vector.load %arg6[%c0_12, %c0_13] : memref<1x128xf32, #tpu.memory_space<vmem>>, vector<1x128xf32>
    %15 = vector.broadcast %14 : vector<1x128xf32> to vector<8x128xf32>
    %16 = arith.addf %13, %15 : vector<8x128xf32>
    %c0_14 = arith.constant 0 : index
    %c0_15 = arith.constant 0 : index
    %17 = vector.load %arg7[%c0_14, %c0_15] : memref<8x128xf32, #tpu.memory_space<vmem>>, vector<8x128xf32>
    tpu.vector_store %arg7[%c0_14, %c0_15], %16 {strides = array<i32>} : memref<8x128xf32, #tpu.memory_space<vmem>>, vector<8x128xf32>,
    return
  }
  func.func @transform_0(%arg0: i32) -> (i32, i32) {
    %c0_i32 = arith.constant 0 : i32
    %c0_i32_0 = arith.constant 0 : i32
    return %arg0, %c0_i32 : i32, i32
  }
  func.func @transform_1(%arg0: i32) -> (i32, i32) {
    %c0_i32 = arith.constant 0 : i32
    %c0_i32_0 = arith.constant 0 : i32
    return %arg0, %c0_i32 : i32, i32
  }
  func.func @transform_2(%arg0: i32) -> (i32, i32) {
    %c0_i32 = arith.constant 0 : i32
    %c0_i32_0 = arith.constant 0 : i32
    %c0_i32_1 = arith.constant 0 : i32
    return %c0_i32, %c0_i32_0 : i32, i32
  }
  func.func @transform_3(%arg0: i32) -> (i32, i32) {
    %c0_i32 = arith.constant 0 : i32
    %c0_i32_0 = arith.constant 0 : i32
    %c0_i32_1 = arith.constant 0 : i32
    return %c0_i32, %c0_i32_0 : i32, i32
  }
  func.func @transform_4(%arg0: i32) -> (i32, i32) {
    %c0_i32 = arith.constant 0 : i32
    %c0_i32_0 = arith.constant 0 : i32
    %c0_i32_1 = arith.constant 0 : i32
    return %c0_i32, %c0_i32_0 : i32, i32
  }
  func.func @transform_5(%arg0: i32) -> (i32, i32) {
    %c0_i32 = arith.constant 0 : i32
    %c0_i32_0 = arith.constant 0 : i32
    %c0_i32_1 = arith.constant 0 : i32
    return %c0_i32, %c0_i32_0 : i32, i32
  }
  func.func @transform_6(%arg0: i32) -> (i32, i32) {
    %c0_i32 = arith.constant 0 : i32
    %c0_i32_0 = arith.constant 0 : i32
    return %arg0, %c0_i32 : i32, i32
  }
}

</mosaic_0001>

<llo_original>
// kernel: tile.13
$region0: #{tile.13}
  #allocation0 [shape = 's32[1]{0}', space=sflag, size = 0x4, scoped, tag = 'scoped memory for tile.13']
  %s0 = inlined_call_operand.vmem [shape: f32[4], index: 0, kind: input, shape index: {}]
  %s1 = inlined_call_operand.vmem [shape: f32[32,4], index: 1, kind: output, shape index: {}]
  // Predicated region
  $region2: #{tile.13} parent=0 // pred_check
    _
  $region3: #{tile.13} parent=0 // pred_check_branch
    %3 = sbr.rel (0) target = $region5
  $region4: #{tile.13} parent=0 // pred_region
    _
  $region5: #{tile.13} parent=0 // pred_fallthru
    _
  %v4 = vld [vmem:[%s0] ss:$0 sm:$0xff]
  %5 = vst [vmem:[%s1] sm:$0xff] %v4
  %s6 = scalar_lea.vmem %s1, 8
  %7 = vst [vmem:[%s6] sm:$0xff] %v4
  %s8 = scalar_lea.vmem %s1, 16
  %9 = vst [vmem:[%s8] sm:$0xff] %v4
  %s10 = scalar_lea.vmem %s1, 24
  %11 = vst [vmem:[%s10] sm:$0xff] %v4

// kernel: tile.14
$region0: #{tile.14}
  %s0 = inlined_call_operand.vmem [shape: f32[32,4], index: 0, kind: input, shape index: {}]
  %s1 = inlined_call_operand.vmem [shape: f32[1,128], index: 1, kind: output, shape index: {}]
  $region1: #{tile.14} parent=0
    #allocation0 [shape = 'u8[4096]{0}', space=vmem, size = 0x1000, scoped, tag = 'scoped mem for output reshape']
    %v2 = vld [vmem:[%s0] sm:$0x1]
    %vm3 = vcmask 31744
    %4 = vst.msk [vmem:[#allocation0] sm:$0x1] %vm3, %v2
    %s5 = scalar_lea.vmem %s0, 31
    %v6 = vld [vmem:[%s5] sm:$0x1]
    %7 = vrot.lane.b32.xlu0 %v6, 124
    %v8 = vpop.permute.xlu0 %7
    %vm9 = vcmask 1048544
    %10 = vst.msk [vmem:[#allocation0] sm:$0x1] %vm9, %v8
    %s11 = scalar_lea.vmem %s0, 30
    %v12 = vld [vmem:[%s11] sm:$0x1]
    %13 = vrot.lane.b32.xlu0 %v12, 120
    %v14 = vpop.permute.xlu0 %13
    %vm15 = vcmask 1015744
    %16 = vst.msk [vmem:[#allocation0] sm:$0x1] %vm15, %v14
    %s17 = scalar_lea.vmem %s0, 29
    %v18 = vld [vmem:[%s17] sm:$0x1]
    %19 = vrot.lane.b32.xlu0 %v18, 116
    %v20 = vpop.permute.xlu0 %19
    %vm21 = vcmask 982944
    %22 = vst.msk [vmem:[#allocation0] sm:$0x1] %vm21, %v20
    %s23 = scalar_lea.vmem %s0, 28
    %v24 = vld [vmem:[%s23] sm:$0x1]
    %25 = vrot.lane.b32.xlu0 %v24, 112
    %v26 = vpop.permute.xlu0 %25
    %vm27 = vcmask 950144
    %28 = vst.msk [vmem:[#allocation0] sm:$0x1] %vm27, %v26
    %s29 = scalar_lea.vmem %s0, 27
    %v30 = vld [vmem:[%s29] sm:$0x1]
    %31 = vrot.lane.b32.xlu0 %v30, 108
    %v32 = vpop.permute.xlu0 %31
    %vm33 = vcmask 917344
    %34 = vst.msk [vmem:[#allocation0] sm:$0x1] %vm33, %v32
    %s35 = scalar_lea.vmem %s0, 26
    %v36 = vld [vmem:[%s35] sm:$0x1]
    %37 = vrot.lane.b32.xlu0 %v36, 104
    %v38 = vpop.permute.xlu0 %37
    %vm39 = vcmask 884544
    %40 = vst.msk [vmem:[#allocation0] sm:$0x1] %vm39, %v38
    %s41 = scalar_lea.vmem %s0, 25
    %v42 = vld [vmem:[%s41] sm:$0x1]
    %43 = vrot.lane.b32.xlu0 %v42, 100
    %v44 = vpop.permute.xlu0 %43
    %vm45 = vcmask 851744
    %46 = vst.msk [vmem:[#allocation0] sm:$0x1] %vm45, %v44
    %s47 = scalar_lea.vmem %s0, 24
    %v48 = vld [vmem:[%s47] sm:$0x1]
    %49 = vrot.lane.b32.xlu0 %v48, 96
    %v50 = vpop.permute.xlu0 %49
    %vm51 = vcmask 818944
    %52 = vst.msk [vmem:[#allocation0] sm:$0x1] %vm51, %v50
    %s53 = scalar_lea.vmem %s0, 23
    %v54 = vld [vmem:[%s53] sm:$0x1]
    %55 = vrot.lane.b32.xlu0 %v54, 92
    %v56 = vpop.permute.xlu0 %55
    %vm57 = vcmask 786144
    %58 = vst.msk [vmem:[#allocation0] sm:$0x1] %vm57, %v56
    %s59 = scalar_lea.vmem %s0, 22
    %v60 = vld [vmem:[%s59] sm:$0x1]
    %61 = vrot.lane.b32.xlu0 %v60, 88
    %v62 = vpop.permute.xlu0 %61
    %vm63 = vcmask 753344
    %64 = vst.msk [vmem:[#allocation0] sm:$0x1] %vm63, %v62
    %s65 = scalar_lea.vmem %s0, 21
    %v66 = vld [vmem:[%s65] sm:$0x1]
    %67 = vrot.lane.b32.xlu0 %v66, 84
    %v68 = vpop.permute.xlu0 %67
    %vm69 = vcmask 720544
    %70 = vst.msk [vmem:[#allocation0] sm:$0x1] %vm69, %v68
    %s71 = scalar_lea.vmem %s0, 20
    %v72 = vld [vmem:[%s71] sm:$0x1]
    %73 = vrot.lane.b32.xlu0 %v72, 80
    %v74 = vpop.permute.xlu0 %73
    %vm75 = vcmask 687744
    %76 = vst.msk [vmem:[#allocation0] sm:$0x1] %vm75, %v74
    %s77 = scalar_lea.vmem %s0, 19
    %v78 = vld [vmem:[%s77] sm:$0x1]
    %79 = vrot.lane.b32.xlu0 %v78, 76
    %v80 = vpop.permute.xlu0 %79
    %vm81 = vcmask 654944
    %82 = vst.msk [vmem:[#allocation0] sm:$0x1] %vm81, %v80
    %s83 = scalar_lea.vmem %s0, 18
    %v84 = vld [vmem:[%s83] sm:$0x1]
    %85 = vrot.lane.b32.xlu0 %v84, 72
    %v86 = vpop.permute.xlu0 %85
    %vm87 = vcmask 622144
    %88 = vst.msk [vmem:[#allocation0] sm:$0x1] %vm87, %v86
    %s89 = scalar_lea.vmem %s0, 17
    %v90 = vld [vmem:[%s89] sm:$0x1]
    %91 = vrot.lane.b32.xlu0 %v90, 68
    %v92 = vpop.permute.xlu0 %91
    %vm93 = vcmask 589344
    %94 = vst.msk [vmem:[#allocation0] sm:$0x1] %vm93, %v92
    %s95 = scalar_lea.vmem %s0, 16
    %v96 = vld [vmem:[%s95] sm:$0x1]
    %97 = vrot.lane.b32.xlu0 %v96, 64
    %v98 = vpop.permute.xlu0 %97
    %vm99 = vcmask 556544
    %100 = vst.msk [vmem:[#allocation0] sm:$0x1] %vm99, %v98
    %s101 = scalar_lea.vmem %s0, 15
    %v102 = vld [vmem:[%s101] sm:$0x1]
    %103 = vrot.lane.b32.xlu0 %v102, 60
    %v104 = vpop.permute.xlu0 %103
    %vm105 = vcmask 523744
    %106 = vst.msk [vmem:[#allocation0] sm:$0x1] %vm105, %v104
    %s107 = scalar_lea.vmem %s0, 14
    %v108 = vld [vmem:[%s107] sm:$0x1]
    %109 = vrot.lane.b32.xlu0 %v108, 56
    %v110 = vpop.permute.xlu0 %109
    %vm111 = vcmask 490944
    %112 = vst.msk [vmem:[#allocation0] sm:$0x1] %vm111, %v110
    %s113 = scalar_lea.vmem %s0, 13
    %v114 = vld [vmem:[%s113] sm:$0x1]
    %115 = vrot.lane.b32.xlu0 %v114, 52
    %v116 = vpop.permute.xlu0 %115
    %vm117 = vcmask 458144
    %118 = vst.msk [vmem:[#allocation0] sm:$0x1] %vm117, %v116
    %s119 = scalar_lea.vmem %s0, 12
    %v120 = vld [vmem:[%s119] sm:$0x1]
    %121 = vrot.lane.b32.xlu0 %v120, 48
    %v122 = vpop.permute.xlu0 %121
    %vm123 = vcmask 425344
    %124 = vst.msk [vmem:[#allocation0] sm:$0x1] %vm123, %v122
    %s125 = scalar_lea.vmem %s0, 11
    %v126 = vld [vmem:[%s125] sm:$0x1]
    %127 = vrot.lane.b32.xlu0 %v126, 44
    %v128 = vpop.permute.xlu0 %127
    %vm129 = vcmask 392544
    %130 = vst.msk [vmem:[#allocation0] sm:$0x1] %vm129, %v128
    %s131 = scalar_lea.vmem %s0, 10
    %v132 = vld [vmem:[%s131] sm:$0x1]
    %133 = vrot.lane.b32.xlu0 %v132, 40
    %v134 = vpop.permute.xlu0 %133
    %vm135 = vcmask 359744
    %136 = vst.msk [vmem:[#allocation0] sm:$0x1] %vm135, %v134
    %s137 = scalar_lea.vmem %s0, 9
    %v138 = vld [vmem:[%s137] sm:$0x1]
    %139 = vrot.lane.b32.xlu0 %v138, 36
    %v140 = vpop.permute.xlu0 %139
    %vm141 = vcmask 326944
    %142 = vst.msk [vmem:[#allocation0] sm:$0x1] %vm141, %v140
    %s143 = scalar_lea.vmem %s0, 8
    %v144 = vld [vmem:[%s143] sm:$0x1]
    %145 = vrot.lane.b32.xlu0 %v144, 32
    %v146 = vpop.permute.xlu0 %145
    %vm147 = vcmask 294144
    %148 = vst.msk [vmem:[#allocation0] sm:$0x1] %vm147, %v146
    %s149 = scalar_lea.vmem %s0, 7
    %v150 = vld [vmem:[%s149] sm:$0x1]
    %151 = vrot.lane.b32.xlu0 %v150, 28
    %v152 = vpop.permute.xlu0 %151
    %vm153 = vcmask 261344
    %154 = vst.msk [vmem:[#allocation0] sm:$0x1] %vm153, %v152
    %s155 = scalar_lea.vmem %s0, 6
    %v156 = vld [vmem:[%s155] sm:$0x1]
    %157 = vrot.lane.b32.xlu0 %v156, 24
    %v158 = vpop.permute.xlu0 %157
    %vm159 = vcmask 228544
    %160 = vst.msk [vmem:[#allocation0] sm:$0x1] %vm159, %v158
    %s161 = scalar_lea.vmem %s0, 5
    %v162 = vld [vmem:[%s161] sm:$0x1]
    %163 = vrot.lane.b32.xlu0 %v162, 20
    %v164 = vpop.permute.xlu0 %163
    %vm165 = vcmask 195744
    %166 = vst.msk [vmem:[#allocation0] sm:$0x1] %vm165, %v164
    %s167 = scalar_lea.vmem %s0, 4
    %v168 = vld [vmem:[%s167] sm:$0x1]
    %169 = vrot.lane.b32.xlu0 %v168, 16
    %v170 = vpop.permute.xlu0 %169
    %vm171 = vcmask 162944
    %172 = vst.msk [vmem:[#allocation0] sm:$0x1] %vm171, %v170
    %s173 = scalar_lea.vmem %s0, 3
    %v174 = vld [vmem:[%s173] sm:$0x1]
    %175 = vrot.lane.b32.xlu0 %v174, 12
    %v176 = vpop.permute.xlu0 %175
    %vm177 = vcmask 130144
    %178 = vst.msk [vmem:[#allocation0] sm:$0x1] %vm177, %v176
    %s179 = scalar_lea.vmem %s0, 2
    %v180 = vld [vmem:[%s179] sm:$0x1]
    %181 = vrot.lane.b32.xlu0 %v180, 8
    %v182 = vpop.permute.xlu0 %181
    %vm183 = vcmask 97344
    %184 = vst.msk [vmem:[#allocation0] sm:$0x1] %vm183, %v182
    %s185 = scalar_lea.vmem %s0, 1
    %v186 = vld [vmem:[%s185] sm:$0x1]
    %187 = vrot.lane.b32.xlu0 %v186, 4
    %v188 = vpop.permute.xlu0 %187
    %vm189 = vcmask 64544
    %190 = vst.msk [vmem:[#allocation0] sm:$0x1] %vm189, %v188
    %s192 = sshll.u32 1, 1
    %s193 = ssub.s32 %s192, 1
    %v195 = vld [vmem:[#allocation0] sm:%s193]
    %s196 = sshll.u32 1, 1
    %s197 = ssub.s32 %s196, 1
    %198 = vst [vmem:[%s1] sm:%s197] %v195

// kernel: resblock_pallas_nhwc.1
$region0: #{resblock_pallas_nhwc.1}
  #allocation0 [shape = 'u32[]', space=smem, size = 0x4, offset = 0x4, fixed_abs, tag = 'smem constant byte address 0x4 - core index']
  #allocation1 [shape = 'u32[144,128]{1,0:T(1,128)}', space=vmem, size = 0x12000, scoped, tag = 'internal scratch']
  %s0 = inlined_call_operand.vmem [shape: f32[16,384], index: 0, kind: input, shape index: {}]
  %s1 = inlined_call_operand.vmem [shape: f32[16,128], index: 1, kind: input, shape index: {}]
  %s2 = inlined_call_operand.vmem [shape: f32[384,128], index: 2, kind: input, shape index: {}]
  %s3 = inlined_call_operand.vmem [shape: f32[128,128], index: 3, kind: input, shape index: {}]
  %s4 = inlined_call_operand.vmem [shape: f32[1,128], index: 4, kind: input, shape index: {}]
  %s5 = inlined_call_operand.vmem [shape: f32[1,128], index: 5, kind: input, shape index: {}]
  %s6 = inlined_call_operand.vmem [shape: f32[16,128], index: 6, kind: output, shape index: {}]
  %s7 = sld [smem:[#allocation0]]
  $region57: #{resblock_pallas_nhwc.1} parent=0
    _
  %s9 = ssub.s32 1, %s7
  %s10 = scalar_select 0, %s9, %s7
  loop: start=0, step=1, limit=4
  $region2: #{resblock_pallas_nhwc.1} parent=0 // loop_pre_header
    _
  $region3: #{resblock_pallas_nhwc.1} parent=0 // loop_header
    %s12 = sphi 0, %s16
    %p13 = scmp.ge.s32.totalorder %s12, 4
    %s22 = sphi 0, %s24
    %s25 = sphi 0, %s22
    %s26 = sphi 0, %s25
    %s42 = sphi 0, %s26
    %s48 = sphi 0, %s50
    %s51 = sphi 0, %s48
    %s52 = sphi 0, %s51
    %s68 = sphi 0, %s52
    %s72 = sphi 0, %s72
    %s74 = sphi 0, %s72
    %s75 = sphi 0, %s74
    %s89 = sphi 0, %s75
    %s93 = sphi 0, %s93
    %s95 = sphi 0, %s93
    %s96 = sphi 0, %s95
    %s110 = sphi 0, %s96
    %s114 = sphi 0, %s114
    %s116 = sphi 0, %s114
    %s117 = sphi 0, %s116
    %s131 = sphi 0, %s117
    %s135 = sphi 0, %s135
    %s137 = sphi 0, %s135
    %s138 = sphi 0, %s137
    %s152 = sphi 0, %s138
    %s158 = sphi 0, %s160
    %s161 = sphi 0, %s158
    %s162 = sphi 0, %s161
    %s178 = sphi 0, %s162
  $region4: #{resblock_pallas_nhwc.1} parent=0 // loop_header_branch
    %15 = sbr.rel (%p13) target = $region8
  $region5: #{resblock_pallas_nhwc.1} parent=0 // loop_body
    %s17 = ssub.s32 %s12, 1
    %s18 = ssub.s32 %s12, 2
    %s19 = sadd.s32 %s12, 1
    %s20 = ssub.s32 %s12, %s19
    %p21 = scmp.eq.s32.totalorder %s20, 0
    %s23 = sadd.s32 %s22, 1
    %s24 = scalar_select %p21, %s22, %s23
    %p27 = pneg %p21
    %p28 = scmp.eq.s32.totalorder %s12, 1
    %p29 = por %p27, %p28
    %p30 = scmp.ne.s32.totalorder %s22, %s25
    %p31 = scmp.eq.s32.totalorder %s12, 0
    %p32 = por %p30, %p31
    %p33 = scmp.ne.s32.totalorder %s22, %s25
    %p34 = scmp.eq.s32.totalorder %s17, 1
    %p35 = por %p33, %p34
    %p36 = scmp.ne.s32.totalorder %s25, %s26
    %p37 = scmp.eq.s32.totalorder %s17, 0
    %p38 = por %p36, %p37
    %p39 = scmp.ne.s32.totalorder %s25, %s26
    %p40 = scmp.eq.s32.totalorder %s18, 1
    %p41 = por %p39, %p40
    %p43 = scmp.ne.s32.totalorder %s26, %s42
    %p44 = scmp.eq.s32.totalorder %s18, 0
    %p45 = por %p43, %p44
    %s46 = ssub.s32 %s12, %s19
    %p47 = scmp.eq.s32.totalorder %s46, 0
    %s49 = sadd.s32 %s48, 1
    %s50 = scalar_select %p47, %s48, %s49
    %p53 = pneg %p47
    %p54 = scmp.eq.s32.totalorder %s12, 1
    %p55 = por %p53, %p54
    %p56 = scmp.ne.s32.totalorder %s48, %s51
    %p57 = scmp.eq.s32.totalorder %s12, 0
    %p58 = por %p56, %p57
    %p59 = scmp.ne.s32.totalorder %s48, %s51
    %p60 = scmp.eq.s32.totalorder %s17, 1
    %p61 = por %p59, %p60
    %p62 = scmp.ne.s32.totalorder %s51, %s52
    %p63 = scmp.eq.s32.totalorder %s17, 0
    %p64 = por %p62, %p63
    %p65 = scmp.ne.s32.totalorder %s51, %s52
    %p66 = scmp.eq.s32.totalorder %s18, 1
    %p67 = por %p65, %p66
    %p69 = scmp.ne.s32.totalorder %s52, %s68
    %p70 = scmp.eq.s32.totalorder %s18, 0
    %p71 = por %p69, %p70
    %s73 = sadd.s32 %s72, 1
    %p76 = scmp.eq.s32.totalorder %s12, 1
    %p77 = scmp.ne.s32.totalorder %s72, %s74
    %p78 = scmp.eq.s32.totalorder %s12, 0
    %p79 = por %p77, %p78
    %p80 = scmp.ne.s32.totalorder %s72, %s74
    %p81 = scmp.eq.s32.totalorder %s17, 1
    %p82 = por %p80, %p81
    %p83 = scmp.ne.s32.totalorder %s74, %s75
    %p84 = scmp.eq.s32.totalorder %s17, 0
    %p85 = por %p83, %p84
    %p86 = scmp.ne.s32.totalorder %s74, %s75
    %p87 = scmp.eq.s32.totalorder %s18, 1
    %p88 = por %p86, %p87
    %p90 = scmp.ne.s32.totalorder %s75, %s89
    %p91 = scmp.eq.s32.totalorder %s18, 0
    %p92 = por %p90, %p91
    %s94 = sadd.s32 %s93, 1
    %p97 = scmp.eq.s32.totalorder %s12, 1
    %p98 = scmp.ne.s32.totalorder %s93, %s95
    %p99 = scmp.eq.s32.totalorder %s12, 0
    %p100 = por %p98, %p99
    %p101 = scmp.ne.s32.totalorder %s93, %s95
    %p102 = scmp.eq.s32.totalorder %s17, 1
    %p103 = por %p101, %p102
    %p104 = scmp.ne.s32.totalorder %s95, %s96
    %p105 = scmp.eq.s32.totalorder %s17, 0
    %p106 = por %p104, %p105
    %p107 = scmp.ne.s32.totalorder %s95, %s96
    %p108 = scmp.eq.s32.totalorder %s18, 1
    %p109 = por %p107, %p108
    %p111 = scmp.ne.s32.totalorder %s96, %s110
    %p112 = scmp.eq.s32.totalorder %s18, 0
    %p113 = por %p111, %p112
    %s115 = sadd.s32 %s114, 1
    %p118 = scmp.eq.s32.totalorder %s12, 1
    %p119 = scmp.ne.s32.totalorder %s114, %s116
    %p120 = scmp.eq.s32.totalorder %s12, 0
    %p121 = por %p119, %p120
    %p122 = scmp.ne.s32.totalorder %s114, %s116
    %p123 = scmp.eq.s32.totalorder %s17, 1
    %p124 = por %p122, %p123
    %p125 = scmp.ne.s32.totalorder %s116, %s117
    %p126 = scmp.eq.s32.totalorder %s17, 0
    %p127 = por %p125, %p126
    %p128 = scmp.ne.s32.totalorder %s116, %s117
    %p129 = scmp.eq.s32.totalorder %s18, 1
    %p130 = por %p128, %p129
    %p132 = scmp.ne.s32.totalorder %s117, %s131
    %p133 = scmp.eq.s32.totalorder %s18, 0
    %p134 = por %p132, %p133
    %s136 = sadd.s32 %s135, 1
    %p139 = scmp.eq.s32.totalorder %s12, 1
    %p140 = scmp.ne.s32.totalorder %s135, %s137
    %p141 = scmp.eq.s32.totalorder %s12, 0
    %p142 = por %p140, %p141
    %p143 = scmp.ne.s32.totalorder %s135, %s137
    %p144 = scmp.eq.s32.totalorder %s17, 1
    %p145 = por %p143, %p144
    %p146 = scmp.ne.s32.totalorder %s137, %s138
    %p147 = scmp.eq.s32.totalorder %s17, 0
    %p148 = por %p146, %p147
    %p149 = scmp.ne.s32.totalorder %s137, %s138
    %p150 = scmp.eq.s32.totalorder %s18, 1
    %p151 = por %p149, %p150
    %p153 = scmp.ne.s32.totalorder %s138, %s152
    %p154 = scmp.eq.s32.totalorder %s18, 0
    %p155 = por %p153, %p154
    %s156 = ssub.s32 %s12, %s19
    %p157 = scmp.eq.s32.totalorder %s156, 0
    %s159 = sadd.s32 %s158, 1
    %s160 = scalar_select %p157, %s158, %s159
    %p163 = pneg %p157
    %p164 = scmp.eq.s32.totalorder %s12, 1
    %p165 = por %p163, %p164
    %p166 = scmp.ne.s32.totalorder %s158, %s161
    %p167 = scmp.eq.s32.totalorder %s12, 0
    %p168 = por %p166, %p167
    %p169 = scmp.ne.s32.totalorder %s158, %s161
    %p170 = scmp.eq.s32.totalorder %s17, 1
    %p171 = por %p169, %p170
    %p172 = scmp.ne.s32.totalorder %s161, %s162
    %p173 = scmp.eq.s32.totalorder %s17, 0
    %p174 = por %p172, %p173
    %p175 = scmp.ne.s32.totalorder %s161, %s162
    %p176 = scmp.eq.s32.totalorder %s18, 1
    %p177 = por %p175, %p176
    %p179 = scmp.ne.s32.totalorder %s162, %s178
    %p180 = scmp.eq.s32.totalorder %s18, 0
    %p181 = por %p179, %p180
    %p182 = scmp.le.s32.totalorder 1, %s12
    %p183 = scmp.lt.s32.totalorder %s12, 3
    %p184 = pnand %p182, %p183
    %p185 = pneg %p184
    // Predicated region
    $region9: #{resblock_pallas_nhwc.1} parent=5 // pred_check
      _
    $region10: #{resblock_pallas_nhwc.1} parent=5 // pred_check_branch
      %187 = sbr.rel (%p184) target = $region12
    $region11: #{resblock_pallas_nhwc.1} parent=5 // pred_region
      %s188 = ssub.s32 %s12, 1
      // Predicated region
      $region13: #{resblock_pallas_nhwc.1} parent=11 // pred_check
        %p189 = pneg %p85
      $region14: #{resblock_pallas_nhwc.1} parent=11 // pred_check_branch
        %191 = sbr.rel (%p189) target = $region16
      $region15: #{resblock_pallas_nhwc.1} parent=11 // pred_region
        _
      $region16: #{resblock_pallas_nhwc.1} parent=11 // pred_fallthru
        _
      // Predicated region
      $region17: #{resblock_pallas_nhwc.1} parent=11 // pred_check
        %p192 = pneg %p106
      $region18: #{resblock_pallas_nhwc.1} parent=11 // pred_check_branch
        %194 = sbr.rel (%p192) target = $region20
      $region19: #{resblock_pallas_nhwc.1} parent=11 // pred_region
        _
      $region20: #{resblock_pallas_nhwc.1} parent=11 // pred_fallthru
        _
      // Predicated region
      $region21: #{resblock_pallas_nhwc.1} parent=11 // pred_check
        %p195 = pneg %p127
      $region22: #{resblock_pallas_nhwc.1} parent=11 // pred_check_branch
        %197 = sbr.rel (%p195) target = $region24
      $region23: #{resblock_pallas_nhwc.1} parent=11 // pred_region
        _
      $region24: #{resblock_pallas_nhwc.1} parent=11 // pred_fallthru
        _
      // Predicated region
      $region25: #{resblock_pallas_nhwc.1} parent=11 // pred_check
        %p198 = pneg %p148
      $region26: #{resblock_pallas_nhwc.1} parent=11 // pred_check_branch
        %200 = sbr.rel (%p198) target = $region28
      $region27: #{resblock_pallas_nhwc.1} parent=11 // pred_region
        _
      $region28: #{resblock_pallas_nhwc.1} parent=11 // pred_fallthru
        _
    $region12: #{resblock_pallas_nhwc.1} parent=5 // pred_fallthru
      _
    %p201 = scmp.lt.s32.totalorder %s12, 2
    // Predicated region
    $region29: #{resblock_pallas_nhwc.1} parent=5 // pred_check
      %p202 = pneg %p201
    $region30: #{resblock_pallas_nhwc.1} parent=5 // pred_check_branch
      %204 = sbr.rel (%p202) target = $region32
    $region31: #{resblock_pallas_nhwc.1} parent=5 // pred_region
      // Predicated region
      $region33: #{resblock_pallas_nhwc.1} parent=31 // pred_check
        %p205 = pneg %p32
      $region34: #{resblock_pallas_nhwc.1} parent=31 // pred_check_branch
        %207 = sbr.rel (%p205) target = $region36
      $region35: #{resblock_pallas_nhwc.1} parent=31 // pred_region
        %p208 = scmp.lt.s32.totalorder %s12, 1
        %s209 = scalar_select %p208, %s12, 1
        %s210 = smul.addr %s209, 3
        %s211 = smul.addr %s210, 8
        %s212 = scalar_lea.vmem %s0, %s211
      $region36: #{resblock_pallas_nhwc.1} parent=31 // pred_fallthru
        _
      // Predicated region
      $region37: #{resblock_pallas_nhwc.1} parent=31 // pred_check
        %p213 = pneg %p58
      $region38: #{resblock_pallas_nhwc.1} parent=31 // pred_check_branch
        %215 = sbr.rel (%p213) target = $region40
      $region39: #{resblock_pallas_nhwc.1} parent=31 // pred_region
        %p216 = scmp.lt.s32.totalorder %s12, 1
        %s217 = scalar_select %p216, %s12, 1
        %s218 = smul.addr %s217, 8
        %s219 = scalar_lea.vmem %s1, %s218
      $region40: #{resblock_pallas_nhwc.1} parent=31 // pred_fallthru
        _
    $region32: #{resblock_pallas_nhwc.1} parent=5 // pred_fallthru
      _
    %p220 = scmp.le.s32.totalorder 1, %s12
    %p221 = scmp.lt.s32.totalorder %s12, 3
    %p222 = pnand %p220, %p221
    %p223 = pneg %p222
    // Predicated region
    $region41: #{resblock_pallas_nhwc.1} parent=5 // pred_check
      _
    $region42: #{resblock_pallas_nhwc.1} parent=5 // pred_check_branch
      %225 = sbr.rel (%p222) target = $region44
    $region43: #{resblock_pallas_nhwc.1} parent=5 // pred_region
      %s226 = ssub.s32 %s12, 1
      %p227 = scmp.lt.s32.totalorder %s17, 1
      %s228 = scalar_select %p227, %s17, 1
      %s229 = smul.addr %s228, 3
      %s230 = smul.addr %s229, 8
      %s231 = scalar_lea.vmem %s0, %s230
      %p232 = pneg %p38
      %p233 = pneg %p35
      %p234 = scmp.lt.s32.totalorder %s17, 1
      %s235 = scalar_select %p234, %s17, 1
      %s236 = smul.addr %s235, 8
      %s237 = scalar_lea.vmem %s1, %s236
      %p238 = pneg %p64
      %p239 = pneg %p61
      %p240 = pneg %p85
      %p241 = pneg %p82
      %p242 = pneg %p106
      %p243 = pneg %p103
      %p244 = pneg %p127
      %p245 = pneg %p124
      %p246 = pneg %p148
      %p247 = pneg %p145
      %p248 = pneg %p174
      %p249 = pneg %p171
      %p250 = scmp.lt.s32.totalorder %s17, 1
      %s251 = scalar_select %p250, %s17, 1
      %s252 = smul.addr %s251, 8
      %s253 = scalar_lea.vmem %s6, %s252
      %p254 = scmp.lt.s32.totalorder %s17, 1
      %s255 = scalar_select %p254, %s17, 1
      %s256 = smul.addr %s255, 3
      %s257 = smul.addr %s256, 8
      %s258 = scalar_lea.vmem %s0, %s257
      %p259 = scmp.lt.s32.totalorder %s17, 1
      %s260 = scalar_select %p259, %s17, 1
      %s261 = smul.addr %s260, 8
      %s262 = scalar_lea.vmem %s1, %s261
      %p263 = scmp.lt.s32.totalorder %s17, 1
      %s264 = scalar_select %p263, %s17, 1
      %s265 = smul.addr %s264, 8
      %s266 = scalar_lea.vmem %s6, %s265
      %v267 = vld [vmem:[%s258] sm:$0xff]
      %v268 = vld [vmem:[%s258 + $0x8] sm:$0xff]
      %v269 = vld [vmem:[%s258 + $0x10] sm:$0xff]
      %v270 = vmax.f32 %v267, 0.0
      %v271 = vmax.f32 %v268, 0.0
      %v272 = vmax.f32 %v269, 0.0
      %v273 = vld [vmem:[%s2] sm:$0xff]
      %v274 = vld [vmem:[%s2 + $0x8] sm:$0xff]
      %v275 = vld [vmem:[%s2 + $0x10] sm:$0xff]
      %v276 = vld [vmem:[%s2 + $0x18] sm:$0xff]
      %v277 = vld [vmem:[%s2 + $0x20] sm:$0xff]
      %v278 = vld [vmem:[%s2 + $0x28] sm:$0xff]
      %v279 = vld [vmem:[%s2 + $0x30] sm:$0xff]
      %v280 = vld [vmem:[%s2 + $0x38] sm:$0xff]
      %v281 = vld [vmem:[%s2 + $0x40] sm:$0xff]
      %v282 = vld [vmem:[%s2 + $0x48] sm:$0xff]
      %v283 = vld [vmem:[%s2 + $0x50] sm:$0xff]
      %v284 = vld [vmem:[%s2 + $0x58] sm:$0xff]
      %v285 = vld [vmem:[%s2 + $0x60] sm:$0xff]
      %v286 = vld [vmem:[%s2 + $0x68] sm:$0xff]
      %v287 = vld [vmem:[%s2 + $0x70] sm:$0xff]
      %v288 = vld [vmem:[%s2 + $0x78] sm:$0xff]
      %v289 = vld [vmem:[%s2 + $0x80] sm:$0xff]
      %v290 = vld [vmem:[%s2 + $0x88] sm:$0xff]
      %v291 = vld [vmem:[%s2 + $0x90] sm:$0xff]
      %v292 = vld [vmem:[%s2 + $0x98] sm:$0xff]
      %v293 = vld [vmem:[%s2 + $0xa0] sm:$0xff]
      %v294 = vld [vmem:[%s2 + $0xa8] sm:$0xff]
      %v295 = vld [vmem:[%s2 + $0xb0] sm:$0xff]
      %v296 = vld [vmem:[%s2 + $0xb8] sm:$0xff]
      %v297 = vld [vmem:[%s2 + $0xc0] sm:$0xff]
      %v298 = vld [vmem:[%s2 + $0xc8] sm:$0xff]
      %v299 = vld [vmem:[%s2 + $0xd0] sm:$0xff]
      %v300 = vld [vmem:[%s2 + $0xd8] sm:$0xff]
      %v301 = vld [vmem:[%s2 + $0xe0] sm:$0xff]
      %v302 = vld [vmem:[%s2 + $0xe8] sm:$0xff]
      %v303 = vld [vmem:[%s2 + $0xf0] sm:$0xff]
      %v304 = vld [vmem:[%s2 + $0xf8] sm:$0xff]
      %v305 = vld [vmem:[%s2 + $0x100] sm:$0xff]
      %v306 = vld [vmem:[%s2 + $0x108] sm:$0xff]
      %v307 = vld [vmem:[%s2 + $0x110] sm:$0xff]
      %v308 = vld [vmem:[%s2 + $0x118] sm:$0xff]
      %v309 = vld [vmem:[%s2 + $0x120] sm:$0xff]
      %v310 = vld [vmem:[%s2 + $0x128] sm:$0xff]
      %v311 = vld [vmem:[%s2 + $0x130] sm:$0xff]
      %v312 = vld [vmem:[%s2 + $0x138] sm:$0xff]
      %v313 = vld [vmem:[%s2 + $0x140] sm:$0xff]
      %v314 = vld [vmem:[%s2 + $0x148] sm:$0xff]
      %v315 = vld [vmem:[%s2 + $0x150] sm:$0xff]
      %v316 = vld [vmem:[%s2 + $0x158] sm:$0xff]
      %v317 = vld [vmem:[%s2 + $0x160] sm:$0xff]
      %v318 = vld [vmem:[%s2 + $0x168] sm:$0xff]
      %v319 = vld [vmem:[%s2 + $0x170] sm:$0xff]
      %v320 = vld [vmem:[%s2 + $0x178] sm:$0xff]
      %v321 = vld [vmem:[%s4] sm:$0x1]
      %v323 = vlaneseq
      %v324 = vshrl.u32 %v323, 7
      %v325 = vsub.s32 0, %v324
      %v326 = vrot.slane %v321, %v325
      %328 = vmatprep.subr.mxu0 0.0
      %329 = vmatpush1.msra.mxu0 %v288
      %330 = vmatprep.subr.mxu0 0.0
      %331 = vmatpush1.msra.mxu0 %v287
      %332 = vmatprep.subr.mxu0 0.0
      %333 = vmatpush1.msra.mxu0 %v286
      %334 = vmatprep.subr.mxu0 0.0
      %335 = vmatpush1.msra.mxu0 %v285
      %336 = vmatprep.subr.mxu0 0.0
      %337 = vmatpush1.msra.mxu0 %v284
      %338 = vmatprep.subr.mxu0 0.0
      %339 = vmatpush1.msra.mxu0 %v283
      %340 = vmatprep.subr.mxu0 0.0
      %341 = vmatpush1.msra.mxu0 %v282
      %342 = vmatprep.subr.mxu0 0.0
      %343 = vmatpush1.msra.mxu0 %v281
      %344 = vmatprep.subr.mxu0 0.0
      %345 = vmatpush1.msra.mxu0 %v280
      %346 = vmatprep.subr.mxu0 0.0
      %347 = vmatpush1.msra.mxu0 %v279
      %348 = vmatprep.subr.mxu0 0.0
      %349 = vmatpush1.msra.mxu0 %v278
      %350 = vmatprep.subr.mxu0 0.0
      %351 = vmatpush1.msra.mxu0 %v277
      %352 = vmatprep.subr.mxu0 0.0
      %353 = vmatpush1.msra.mxu0 %v276
      %354 = vmatprep.subr.mxu0 0.0
      %355 = vmatpush1.msra.mxu0 %v275
      %356 = vmatprep.subr.mxu0 0.0
      %357 = vmatpush1.msra.mxu0 %v274
      %358 = vmatprep.subr.mxu0 0.0
      %359 = vmatpush1.msra.mxu0 %v273
      %360 = vmatprep.subr.mxu0 0.0
      %361 = vmatpush2.msra.mxu0 %v304
      %362 = vmatprep.subr.mxu0 0.0
      %363 = vmatpush2.msra.mxu0 %v303
      %364 = vmatprep.subr.mxu0 0.0
      %365 = vmatpush2.msra.mxu0 %v302
      %366 = vmatprep.subr.mxu0 0.0
      %367 = vmatpush2.msra.mxu0 %v301
      %368 = vmatprep.subr.mxu0 0.0
      %369 = vmatpush2.msra.mxu0 %v300
      %370 = vmatprep.subr.mxu0 0.0
      %371 = vmatpush2.msra.mxu0 %v299
      %372 = vmatprep.subr.mxu0 0.0
      %373 = vmatpush2.msra.mxu0 %v298
      %374 = vmatprep.subr.mxu0 0.0
      %375 = vmatpush2.msra.mxu0 %v297
      %376 = vmatprep.subr.mxu0 0.0
      %377 = vmatpush2.msra.mxu0 %v296
      %378 = vmatprep.subr.mxu0 0.0
      %379 = vmatpush2.msra.mxu0 %v295
      %380 = vmatprep.subr.mxu0 0.0
      %381 = vmatpush2.msra.mxu0 %v294
      %382 = vmatprep.subr.mxu0 0.0
      %383 = vmatpush2.msra.mxu0 %v293
      %384 = vmatprep.subr.mxu0 0.0
      %385 = vmatpush2.msra.mxu0 %v292
      %386 = vmatprep.subr.mxu0 0.0
      %387 = vmatpush2.msra.mxu0 %v291
      %388 = vmatprep.subr.mxu0 0.0
      %389 = vmatpush2.msra.mxu0 %v290
      %390 = vmatprep.subr.mxu0 0.0
      %391 = vmatpush2.msra.mxu0 %v289
      %392 = vmatprep.mubr.f32.mxu0 %v271
      %393 = vmatmul.mubr.f32.gmra.mxu0 %v270
      %v394 = vpop.f32.mrf.mxu0
      %v395 = vadd.f32 %v326, %v394
      %v396 = vpop.f32.mrf.mxu0
      %397 = vdwg.mxu0
      %398 = vmatprep.subr.mxu0 0.0
      %399 = vmatpush1.msra.mxu0 %v320
      %400 = vmatprep.subr.mxu0 0.0
      %401 = vmatpush1.msra.mxu0 %v319
      %402 = vmatprep.subr.mxu0 0.0
      %403 = vmatpush1.msra.mxu0 %v318
      %404 = vmatprep.subr.mxu0 0.0
      %405 = vmatpush1.msra.mxu0 %v317
      %406 = vmatprep.subr.mxu0 0.0
      %407 = vmatpush1.msra.mxu0 %v316
      %408 = vmatprep.subr.mxu0 0.0
      %409 = vmatpush1.msra.mxu0 %v315
      %410 = vmatprep.subr.mxu0 0.0
      %411 = vmatpush1.msra.mxu0 %v314
      %412 = vmatprep.subr.mxu0 0.0
      %413 = vmatpush1.msra.mxu0 %v313
      %414 = vmatprep.subr.mxu0 0.0
      %415 = vmatpush1.msra.mxu0 %v312
      %416 = vmatprep.subr.mxu0 0.0
      %417 = vmatpush1.msra.mxu0 %v311
      %418 = vmatprep.subr.mxu0 0.0
      %419 = vmatpush1.msra.mxu0 %v310
      %420 = vmatprep.subr.mxu0 0.0
      %421 = vmatpush1.msra.mxu0 %v309
      %422 = vmatprep.subr.mxu0 0.0
      %423 = vmatpush1.msra.mxu0 %v308
      %424 = vmatprep.subr.mxu0 0.0
      %425 = vmatpush1.msra.mxu0 %v307
      %426 = vmatprep.subr.mxu0 0.0
      %427 = vmatpush1.msra.mxu0 %v306
      %428 = vmatprep.subr.mxu0 0.0
      %429 = vmatpush1.msra.mxu0 %v305
      %430 = vmatprep.subr.mxu0 0.0
      %431 = vmatpush2.msra.mxu0 0.0
      %432 = vmatprep.subr.mxu0 0.0
      %433 = vmatpush2.msra.mxu0 0.0
      %434 = vmatprep.subr.mxu0 0.0
      %435 = vmatpush2.msra.mxu0 0.0
      %436 = vmatprep.subr.mxu0 0.0
      %437 = vmatpush2.msra.mxu0 0.0
      %438 = vmatprep.subr.mxu0 0.0
      %439 = vmatpush2.msra.mxu0 0.0
      %440 = vmatprep.subr.mxu0 0.0
      %441 = vmatpush2.msra.mxu0 0.0
      %442 = vmatprep.subr.mxu0 0.0
      %443 = vmatpush2.msra.mxu0 0.0
      %444 = vmatprep.subr.mxu0 0.0
      %445 = vmatpush2.msra.mxu0 0.0
      %446 = vmatprep.subr.mxu0 0.0
      %447 = vmatpush2.msra.mxu0 0.0
      %448 = vmatprep.subr.mxu0 0.0
      %449 = vmatpush2.msra.mxu0 0.0
      %450 = vmatprep.subr.mxu0 0.0
      %451 = vmatpush2.msra.mxu0 0.0
      %452 = vmatprep.subr.mxu0 0.0
      %453 = vmatpush2.msra.mxu0 0.0
      %454 = vmatprep.subr.mxu0 0.0
      %455 = vmatpush2.msra.mxu0 0.0
      %456 = vmatprep.subr.mxu0 0.0
      %457 = vmatpush2.msra.mxu0 0.0
      %458 = vmatprep.subr.mxu0 0.0
      %459 = vmatpush2.msra.mxu0 0.0
      %460 = vmatprep.subr.mxu0 0.0
      %461 = vmatpush2.msra.mxu0 0.0
      %462 = vmatprep.mubr.f32.mxu0 0.0
      %463 = vmatmul.mubr.f32.gmra.mxu0 %v272
      %v464 = vpop.f32.mrf.mxu0
      %v465 = vadd.f32 %v395, %v464
      %v466 = vpop.f32.mrf.mxu0
      %467 = vdwg.mxu0
      %v468 = vmax.f32 %v465, 0.0
      %v469 = vld [vmem:[%s3] sm:$0xff]
      %v470 = vld [vmem:[%s3 + $0x8] sm:$0xff]
      %v471 = vld [vmem:[%s3 + $0x10] sm:$0xff]
      %v472 = vld [vmem:[%s3 + $0x18] sm:$0xff]
      %v473 = vld [vmem:[%s3 + $0x20] sm:$0xff]
      %v474 = vld [vmem:[%s3 + $0x28] sm:$0xff]
      %v475 = vld [vmem:[%s3 + $0x30] sm:$0xff]
      %v476 = vld [vmem:[%s3 + $0x38] sm:$0xff]
      %v477 = vld [vmem:[%s3 + $0x40] sm:$0xff]
      %v478 = vld [vmem:[%s3 + $0x48] sm:$0xff]
      %v479 = vld [vmem:[%s3 + $0x50] sm:$0xff]
      %v480 = vld [vmem:[%s3 + $0x58] sm:$0xff]
      %v481 = vld [vmem:[%s3 + $0x60] sm:$0xff]
      %v482 = vld [vmem:[%s3 + $0x68] sm:$0xff]
      %v483 = vld [vmem:[%s3 + $0x70] sm:$0xff]
      %v484 = vld [vmem:[%s3 + $0x78] sm:$0xff]
      %485 = vmatprep.subr.mxu0 0.0
      %486 = vmatpush1.msra.mxu0 %v484
      %487 = vmatprep.subr.mxu0 0.0
      %488 = vmatpush1.msra.mxu0 %v483
      %489 = vmatprep.subr.mxu0 0.0
      %490 = vmatpush1.msra.mxu0 %v482
      %491 = vmatprep.subr.mxu0 0.0
      %492 = vmatpush1.msra.mxu0 %v481
      %493 = vmatprep.subr.mxu0 0.0
      %494 = vmatpush1.msra.mxu0 %v480
      %495 = vmatprep.subr.mxu0 0.0
      %496 = vmatpush1.msra.mxu0 %v479
      %497 = vmatprep.subr.mxu0 0.0
      %498 = vmatpush1.msra.mxu0 %v478
      %499 = vmatprep.subr.mxu0 0.0
      %500 = vmatpush1.msra.mxu0 %v477
      %501 = vmatprep.subr.mxu0 0.0
      %502 = vmatpush1.msra.mxu0 %v476
      %503 = vmatprep.subr.mxu0 0.0
      %504 = vmatpush1.msra.mxu0 %v475
      %505 = vmatprep.subr.mxu0 0.0
      %506 = vmatpush1.msra.mxu0 %v474
      %507 = vmatprep.subr.mxu0 0.0
      %508 = vmatpush1.msra.mxu0 %v473
      %509 = vmatprep.subr.mxu0 0.0
      %510 = vmatpush1.msra.mxu0 %v472
      %511 = vmatprep.subr.mxu0 0.0
      %512 = vmatpush1.msra.mxu0 %v471
      %513 = vmatprep.subr.mxu0 0.0
      %514 = vmatpush1.msra.mxu0 %v470
      %515 = vmatprep.subr.mxu0 0.0
      %516 = vmatpush1.msra.mxu0 %v469
      %517 = vmatprep.subr.mxu0 0.0
      %518 = vmatpush2.msra.mxu0 0.0
      %519 = vmatprep.subr.mxu0 0.0
      %520 = vmatpush2.msra.mxu0 0.0
      %521 = vmatprep.subr.mxu0 0.0
      %522 = vmatpush2.msra.mxu0 0.0
      %523 = vmatprep.subr.mxu0 0.0
      %524 = vmatpush2.msra.mxu0 0.0
      %525 = vmatprep.subr.mxu0 0.0
      %526 = vmatpush2.msra.mxu0 0.0
      %527 = vmatprep.subr.mxu0 0.0
      %528 = vmatpush2.msra.mxu0 0.0
      %529 = vmatprep.subr.mxu0 0.0
      %530 = vmatpush2.msra.mxu0 0.0
      %531 = vmatprep.subr.mxu0 0.0
      %532 = vmatpush2.msra.mxu0 0.0
      %533 = vmatprep.subr.mxu0 0.0
      %534 = vmatpush2.msra.mxu0 0.0
      %535 = vmatprep.subr.mxu0 0.0
      %536 = vmatpush2.msra.mxu0 0.0
      %537 = vmatprep.subr.mxu0 0.0
      %538 = vmatpush2.msra.mxu0 0.0
      %539 = vmatprep.subr.mxu0 0.0
      %540 = vmatpush2.msra.mxu0 0.0
      %541 = vmatprep.subr.mxu0 0.0
      %542 = vmatpush2.msra.mxu0 0.0
      %543 = vmatprep.subr.mxu0 0.0
      %544 = vmatpush2.msra.mxu0 0.0
      %545 = vmatprep.subr.mxu0 0.0
      %546 = vmatpush2.msra.mxu0 0.0
      %547 = vmatprep.subr.mxu0 0.0
      %548 = vmatpush2.msra.mxu0 0.0
      %549 = vmatprep.mubr.f32.mxu0 0.0
      %550 = vmatmul.mubr.f32.gmra.mxu0 %v468
      %v551 = vpop.f32.mrf.mxu0
      %v552 = vadd.f32 0.0, %v551
      %v553 = vpop.f32.mrf.mxu0
      %554 = vdwg.mxu0
      %v555 = vld [vmem:[%s262] sm:$0xff]
      %v556 = vadd.f32 %v555, %v552
      %v557 = vld [vmem:[%s5] sm:$0x1]
      %v559 = vlaneseq
      %v560 = vshrl.u32 %v559, 7
      %v561 = vsub.s32 0, %v560
      %v562 = vrot.slane %v557, %v561
      %v564 = vadd.f32 %v556, %v562
      %565 = vst [vmem:[%s266] sm:$0xff] %v564
      %p566 = scmp.lt.s32.totalorder %s17, 1
      %s567 = scalar_select %p566, %s17, 1
      %s568 = smul.addr %s567, 8
      %s569 = scalar_lea.vmem %s6, %s568
      // Predicated region
      $region45: #{resblock_pallas_nhwc.1} parent=43 // pred_check
        %p570 = pneg %p171
      $region46: #{resblock_pallas_nhwc.1} parent=43 // pred_check_branch
        %572 = sbr.rel (%p570) target = $region48
      $region47: #{resblock_pallas_nhwc.1} parent=43 // pred_region
        _
      $region48: #{resblock_pallas_nhwc.1} parent=43 // pred_fallthru
        _
    $region44: #{resblock_pallas_nhwc.1} parent=5 // pred_fallthru
      _
    %p573 = scmp.le.s32.totalorder 2, %s12
    // Predicated region
    $region49: #{resblock_pallas_nhwc.1} parent=5 // pred_check
      %p574 = pneg %p573
    $region50: #{resblock_pallas_nhwc.1} parent=5 // pred_check_branch
      %576 = sbr.rel (%p574) target = $region52
    $region51: #{resblock_pallas_nhwc.1} parent=5 // pred_region
      %s577 = ssub.s32 %s12, 2
      // Predicated region
      $region53: #{resblock_pallas_nhwc.1} parent=51 // pred_check
        %p578 = pneg %p177
      $region54: #{resblock_pallas_nhwc.1} parent=51 // pred_check_branch
        %580 = sbr.rel (%p578) target = $region56
      $region55: #{resblock_pallas_nhwc.1} parent=51 // pred_region
        %p581 = scmp.lt.s32.totalorder %s18, 1
        %s582 = scalar_select %p581, %s18, 1
        %s583 = smul.addr %s582, 8
        %s584 = scalar_lea.vmem %s6, %s583
      $region56: #{resblock_pallas_nhwc.1} parent=51 // pred_fallthru
        _
    $region52: #{resblock_pallas_nhwc.1} parent=5 // pred_fallthru
      _
  $region6: #{resblock_pallas_nhwc.1} parent=0 // loop_footer
    %s16 = sadd.s32 1, %s12
  $region7: #{resblock_pallas_nhwc.1} parent=0 // loop_footer_branch
    %11 = sbr.rel target = $region3
  $region8: #{resblock_pallas_nhwc.1} parent=0 // loop_exit
    _

</llo_original>
